<compile_context>
chip_gen: v6e
topology: v6e:2x2x1
jax: 0.10.0
libtpu: 0.0.40
codegen_flags: <defaults>
</compile_context>

<pallas_src>
import functools

import jax
import jax.numpy as jnp
from jax.experimental import pallas as pl
from jax.experimental.pallas import tpu as pltpu


def _round_up(x, m):
    return ((x + m - 1) // m) * m


def se_mlp_kernel(x_ref, w1_ref, w2_ref, b_ref, o_ref, *, cmid_p):
    # x_ref : (M, Cin)           f32  (cast to bf16 in-register for the MXU)
    # w1_ref: (Cin, Cmid_p)      bf16 (zero-padded cols 84->128)
    # w2_ref: (Cmid_p, Cout)     bf16 (zero-padded rows 84->128)
    # b_ref : (1, Cmid_p + Cout) f32  [b1 padded | b2]
    # o_ref : (M, Cout)          f32
    x = x_ref[...].astype(jnp.bfloat16)

    # First matmul: bf16 MXU, f32 accumulation; bias + ReLU in f32 on the VPU.
    h = jnp.dot(x, w1_ref[...], preferred_element_type=jnp.float32)
    h = jnp.maximum(h + b_ref[:, :cmid_p], 0.0)

    # Second matmul: keep both operands bf16 (native MXU path), f32 acc.
    y = jnp.dot(h.astype(jnp.bfloat16), w2_ref[...],
                preferred_element_type=jnp.float32)
    o_ref[...] = (y + b_ref[:, cmid_p:]).astype(o_ref.dtype)


def prepare_params(w1, b1, w2, b2):
    """One-time parameter prep (hoisted out of the forward path).

    Zero-pads the contraction dim Cmid 84->128 (math stays exact: padded h
    cols are relu(0)=0 and padded w2 rows are 0), stores weights as bf16
    (halves the dominant weight-DMA bytes), and concatenates both biases into
    a single f32 row to cut prologue DMA descriptors.
    """
    cin, cmid = w1.shape
    cout = w2.shape[1]
    cmid_p = _round_up(cmid, 128)  # 84 -> 128
    w1_p = jnp.pad(w1, ((0, 0), (0, cmid_p - cmid))).astype(jnp.bfloat16)
    w2_p = jnp.pad(w2, ((0, cmid_p - cmid), (0, 0))).astype(jnp.bfloat16)
    b_cat = jnp.concatenate([jnp.pad(b1, (0, cmid_p - cmid)), b2])
    b_cat = b_cat.reshape(1, cmid_p + cout).astype(jnp.float32)
    return w1_p, w2_p, b_cat


def conv1x1_relu_conv1x1(x_nchw, w1_p, w2_p, b_cat):
    """Fused forward. Params must come from prepare_params()."""
    n, cin, h, w = x_nchw.shape
    cmid_p = w1_p.shape[1]
    cout = w2_p.shape[1]
    m = n * h * w

    # NCHW -> (M, Cin). For the 1x1-spatial case this is a pure reshape/view.
    if h == 1 and w == 1:
        x_mat = x_nchw.reshape(n, cin)
    else:
        x_mat = jnp.transpose(x_nchw, (0, 2, 3, 1)).reshape(m, cin)

    flops = 2 * m * (cin * cmid_p + cmid_p * cout)
    bytes_accessed = (x_mat.size * 4 + w1_p.size * 2 + w2_p.size * 2
                      + b_cat.size * 4 + m * cout * 4)

    vmem = pl.BlockSpec(memory_space=pltpu.MemorySpace.VMEM)
    out = pl.pallas_call(
        functools.partial(se_mlp_kernel, cmid_p=cmid_p),
        out_shape=jax.ShapeDtypeStruct((m, cout), jnp.float32),
        in_specs=[vmem, vmem, vmem, vmem],
        out_specs=vmem,
        cost_estimate=pl.CostEstimate(flops=flops, transcendentals=0,
                                      bytes_accessed=bytes_accessed),
        compiler_params=pltpu.CompilerParams(vmem_limit_bytes=8 * 1024 * 1024),
    )(x_mat, w1_p, w2_p, b_cat)

    if h == 1 and w == 1:
        return out.reshape(n, cout, 1, 1)
    return jnp.transpose(out.reshape(n, h, w, cout), (0, 3, 1, 2))


if __name__ == "__main__":
    key = jax.random.PRNGKey(0)
    k_x, k_w1, k_b1, k_w2, k_b2 = jax.random.split(key, 5)

    N, CIN, CMID, H, W = 1, 336, 84, 1, 1

    # Deterministic synthetic parameters: Conv2d(336->84,1x1), Conv2d(84->336,1x1).
    # PyTorch conv weight is (out, in, 1, 1); we store the matmul form (in, out).
    x = jax.random.normal(k_x, (N, CIN, H, W), dtype=jnp.float32)
    w1 = 0.05 * jax.random.normal(k_w1, (CIN, CMID), dtype=jnp.float32)
    b1 = 0.05 * jax.random.normal(k_b1, (CMID,), dtype=jnp.float32)
    w2 = 0.05 * jax.random.normal(k_w2, (CMID, CIN), dtype=jnp.float32)
    b2 = 0.05 * jax.random.normal(k_b2, (CIN,), dtype=jnp.float32)

    # One-time prep: this is the module's canonical on-device parameter format.
    # (Under training, regenerate when the f32 master weights update.)
    params = jax.block_until_ready(prepare_params(w1, b1, w2, b2))
    w1_p, w2_p, b_cat = params

    fwd = jax.jit(conv1x1_relu_conv1x1)
    y = fwd(x, w1_p, w2_p, b_cat)
    jax.block_until_ready(y)

    # Reference in plain JAX with the same rounding the kernel applies:
    # bf16-rounded x/w1/w2, bf16-rounded intermediate h, f32 accumulation.
    xm = x.reshape(N, CIN)
    xb = xm.astype(jnp.bfloat16).astype(jnp.float32)
    w1r = w1.astype(jnp.bfloat16).astype(jnp.float32)
    w2r = w2.astype(jnp.bfloat16).astype(jnp.float32)
    h_ref = jnp.maximum(jnp.dot(xb, w1r, precision="highest") + b1, 0.0)
    h_ref = h_ref.astype(jnp.bfloat16).astype(jnp.float32)
    ref = (jnp.dot(h_ref, w2r, precision="highest") + b2).reshape(N, CIN, H, W)

    assert y.shape == (N, CIN, H, W)
    err = float(jnp.max(jnp.abs(y - ref)))
    assert jnp.allclose(y, ref, atol=2e-3, rtol=2e-3), f"max abs err {err}"

    print("KERNEL_OK")
</pallas_src>

<mosaic_0001>
module attributes {stable_mosaic.version = 11 : i64} {
  func.func @se_mlp_kernel(%arg0: memref<1x336xf32, #tpu.memory_space<vmem>>, %arg1: memref<336x128xbf16, #tpu.memory_space<vmem>>, %arg2: memref<128x336xbf16, #tpu.memory_space<vmem>>, %arg3: memref<1x464xf32, #tpu.memory_space<vmem>>, %arg4: memref<1x336xf32, #tpu.memory_space<vmem>>) attributes {dimension_semantics = [], scalar_prefetch = 0 : i64, scratch_operands = 0 : i64, tpu.core_type = #tpu.core_type<tc>} {
    %c0 = arith.constant 0 : index
    %c0_0 = arith.constant 0 : index
    %0 = vector.load %arg0[%c0, %c0_0] : memref<1x336xf32, #tpu.memory_space<vmem>>, vector<1x336xf32>
    %1 = arith.truncf %0 : vector<1x336xf32> to vector<1x336xbf16>
    %c0_1 = arith.constant 0 : index
    %c0_2 = arith.constant 0 : index
    %2 = vector.load %arg1[%c0_1, %c0_2] : memref<336x128xbf16, #tpu.memory_space<vmem>>, vector<336x128xbf16>
    %cst = arith.constant dense<0.000000e+00> : vector<1x128xf32>
    %3 = tpu.matmul %1, %2, %cst {dimension_numbers = #tpu.dot_dimension_numbers<[1], [0], [0], [1], [0, 0, 1, 1], [], []>} : vector<1x336xbf16>, vector<336x128xbf16>, vector<1x128xf32> -> vector<1x128xf32>
    %c0_3 = arith.constant 0 : index
    %c0_4 = arith.constant 0 : index
    %4 = vector.load %arg3[%c0_3, %c0_4] : memref<1x464xf32, #tpu.memory_space<vmem>>, vector<1x128xf32>
    %5 = arith.addf %3, %4 : vector<1x128xf32>
    %cst_5 = arith.constant 0.000000e+00 : f32
    %6 = vector.broadcast %cst_5 : f32 to vector<1x128xf32>
    %7 = arith.maximumf %5, %6 : vector<1x128xf32>
    %8 = arith.truncf %7 : vector<1x128xf32> to vector<1x128xbf16>
    %c0_6 = arith.constant 0 : index
    %c0_7 = arith.constant 0 : index
    %9 = vector.load %arg2[%c0_6, %c0_7] : memref<128x336xbf16, #tpu.memory_space<vmem>>, vector<128x336xbf16>
    %cst_8 = arith.constant dense<0.000000e+00> : vector<1x336xf32>
    %10 = tpu.matmul %8, %9, %cst_8 {dimension_numbers = #tpu.dot_dimension_numbers<[1], [0], [0], [1], [0, 0, 1, 1], [], []>} : vector<1x128xbf16>, vector<128x336xbf16>, vector<1x336xf32> -> vector<1x336xf32>
    %c0_9 = arith.constant 0 : index
    %c128 = arith.constant 128 : index
    %11 = vector.load %arg3[%c0_9, %c128] : memref<1x464xf32, #tpu.memory_space<vmem>>, vector<1x336xf32>
    %12 = arith.addf %10, %11 : vector<1x336xf32>
    %c0_10 = arith.constant 0 : index
    %c0_11 = arith.constant 0 : index
    %13 = vector.load %arg4[%c0_10, %c0_11] : memref<1x336xf32, #tpu.memory_space<vmem>>, vector<1x336xf32>
    tpu.vector_store %arg4[%c0_10, %c0_11], %12 {strides = array<i32>} : memref<1x336xf32, #tpu.memory_space<vmem>>, vector<1x336xf32>,
    return
  }
}

</mosaic_0001>

<llo_original>
// kernel: conv1x1_relu_conv1x1.1
$region0: #{conv1x1_relu_conv1x1.1}
  #allocation0 [shape = 'u32[]', space=smem, size = 0x4, offset = 0x4, fixed_abs, tag = 'smem constant byte address 0x4 - core index']
  #allocation1 [shape = 'u32[144,128]{1,0:T(1,128)}', space=vmem, size = 0x12000, scoped, tag = 'internal scratch']
  %s0 = inlined_call_operand.vmem [shape: f32[1,336], index: 0, kind: input, shape index: {}]
  %s1 = inlined_call_operand.vmem [shape: bf16[336,128], index: 1, kind: input, shape index: {}]
  %s2 = inlined_call_operand.vmem [shape: bf16[128,336], index: 2, kind: input, shape index: {}]
  %s3 = inlined_call_operand.vmem [shape: f32[1,464], index: 3, kind: input, shape index: {}]
  %s4 = inlined_call_operand.hbm [shape: f32[1,336], index: 4, kind: output, shape index: {}]
  %s5 = sld [smem:[#allocation0]]
  $region26: #{conv1x1_relu_conv1x1.1} parent=0
    _
  %s7 = ssub.s32 1, %s5
  %s8 = scalar_select 0, %s7, %s5
  $region1: #{conv1x1_relu_conv1x1.1} parent=0
    #allocation2 [shape = 'u8[1536]{0}', space=vmem, size = 0x800, scoped, tag = 'output window, operand 0, single buffered']
    #allocation3 [shape = 's32[1]{0}', space=sflag, size = 0x4, scoped, tag = 'scoped memory for conv1x1_relu_conv1x1.1']
    %9 = vsyncpa [#allocation3], 0
    // Predicated region
    $region2: #{conv1x1_relu_conv1x1.1} parent=1 // pred_check
      _
    $region3: #{conv1x1_relu_conv1x1.1} parent=1 // pred_check_branch
      %11 = sbr.rel (0) target = $region5
    $region4: #{conv1x1_relu_conv1x1.1} parent=1 // pred_region
      _
    $region5: #{conv1x1_relu_conv1x1.1} parent=1 // pred_fallthru
      _
    // Predicated region
    $region6: #{conv1x1_relu_conv1x1.1} parent=1 // pred_check
      _
    $region7: #{conv1x1_relu_conv1x1.1} parent=1 // pred_check_branch
      %13 = sbr.rel (0) target = $region9
    $region8: #{conv1x1_relu_conv1x1.1} parent=1 // pred_region
      _
    $region9: #{conv1x1_relu_conv1x1.1} parent=1 // pred_fallthru
      _
    // Predicated region
    $region10: #{conv1x1_relu_conv1x1.1} parent=1 // pred_check
      _
    $region11: #{conv1x1_relu_conv1x1.1} parent=1 // pred_check_branch
      %15 = sbr.rel (0) target = $region13
    $region12: #{conv1x1_relu_conv1x1.1} parent=1 // pred_region
      _
    $region13: #{conv1x1_relu_conv1x1.1} parent=1 // pred_fallthru
      _
    // Predicated region
    $region14: #{conv1x1_relu_conv1x1.1} parent=1 // pred_check
      _
    $region15: #{conv1x1_relu_conv1x1.1} parent=1 // pred_check_branch
      %17 = sbr.rel (0) target = $region17
    $region16: #{conv1x1_relu_conv1x1.1} parent=1 // pred_region
      _
    $region17: #{conv1x1_relu_conv1x1.1} parent=1 // pred_fallthru
      _
    %v19 = vld [vmem:[%s0] sm:$0x7]
    %v21 = vlaneseq
    %v22 = vshrl.u32 %v21, 7
    %v23 = vsub.s32 0, %v22
    %v24 = vrot.slane %v19, %v23
    %v25 = vlaneseq
    %v26 = vshrl.u32 %v25, 7
    %v27 = vsub.s32 1, %v26
    %v28 = vrot.slane %v19, %v27
    %v29 = vlaneseq
    %v30 = vshrl.u32 %v29, 7
    %v31 = vsub.s32 2, %v30
    %v32 = vrot.slane %v19, %v31
    %v36 = vpack.c.bf16 %v24, %v24
    %v37 = vpack.c.bf16 %v28, %v28
    %v38 = vpack.c.bf16 %v32, %v32
    %v39 = vld [vmem:[%s1] sm:$0xf]
    %v40 = vld [vmem:[%s1 + $0x4] sm:$0xf]
    %v41 = vld [vmem:[%s1 + $0x8] sm:$0xf]
    %v42 = vld [vmem:[%s1 + $0xc] sm:$0xf]
    %v43 = vld [vmem:[%s1 + $0x10] sm:$0xf]
    %v44 = vld [vmem:[%s1 + $0x14] sm:$0xf]
    %v45 = vld [vmem:[%s1 + $0x18] sm:$0xf]
    %v46 = vld [vmem:[%s1 + $0x1c] sm:$0xf]
    %v47 = vld [vmem:[%s1 + $0x20] sm:$0xf]
    %v48 = vld [vmem:[%s1 + $0x24] sm:$0xf]
    %v49 = vld [vmem:[%s1 + $0x28] sm:$0xf]
    %v50 = vld [vmem:[%s1 + $0x2c] sm:$0xf]
    %v51 = vld [vmem:[%s1 + $0x30] sm:$0xf]
    %v52 = vld [vmem:[%s1 + $0x34] sm:$0xf]
    %v53 = vld [vmem:[%s1 + $0x38] sm:$0xf]
    %v54 = vld [vmem:[%s1 + $0x3c] sm:$0xf]
    %v55 = vld [vmem:[%s1 + $0x40] sm:$0xf]
    %v56 = vld [vmem:[%s1 + $0x44] sm:$0xf]
    %v57 = vld [vmem:[%s1 + $0x48] sm:$0xf]
    %v58 = vld [vmem:[%s1 + $0x4c] sm:$0xf]
    %v59 = vld [vmem:[%s1 + $0x50] sm:$0xf]
    %v60 = vld [vmem:[%s1 + $0x54] sm:$0xf]
    %v61 = vld [vmem:[%s1 + $0x58] sm:$0xf]
    %v62 = vld [vmem:[%s1 + $0x5c] sm:$0xf]
    %v63 = vld [vmem:[%s1 + $0x60] sm:$0xf]
    %v64 = vld [vmem:[%s1 + $0x64] sm:$0xf]
    %v65 = vld [vmem:[%s1 + $0x68] sm:$0xf]
    %v66 = vld [vmem:[%s1 + $0x6c] sm:$0xf]
    %v67 = vld [vmem:[%s1 + $0x70] sm:$0xf]
    %v68 = vld [vmem:[%s1 + $0x74] sm:$0xf]
    %v69 = vld [vmem:[%s1 + $0x78] sm:$0xf]
    %v70 = vld [vmem:[%s1 + $0x7c] sm:$0xf]
    %v71 = vld [vmem:[%s1 + $0x80] sm:$0xf]
    %v72 = vld [vmem:[%s1 + $0x84] sm:$0xf]
    %v73 = vld [vmem:[%s1 + $0x88] sm:$0xf]
    %v74 = vld [vmem:[%s1 + $0x8c] sm:$0xf]
    %v75 = vld [vmem:[%s1 + $0x90] sm:$0xf]
    %v76 = vld [vmem:[%s1 + $0x94] sm:$0xf]
    %v77 = vld [vmem:[%s1 + $0x98] sm:$0xf]
    %v78 = vld [vmem:[%s1 + $0x9c] sm:$0xf]
    %v79 = vld [vmem:[%s1 + $0xa0] sm:$0xf]
    %v80 = vld [vmem:[%s1 + $0xa4] sm:$0xf]
    %v81 = vld [vmem:[%s3] sm:$0x1]
    %v124 = vunpack.c.l.b16 %v39
    %v125 = vunpack.c.l.b16 %v40
    %v126 = vunpack.c.l.b16 %v41
    %v127 = vunpack.c.l.b16 %v42
    %v128 = vunpack.c.l.b16 %v43
    %v129 = vunpack.c.l.b16 %v44
    %v130 = vunpack.c.l.b16 %v45
    %v131 = vunpack.c.l.b16 %v46
    %v132 = vunpack.c.l.b16 %v47
    %v133 = vunpack.c.l.b16 %v48
    %v134 = vunpack.c.l.b16 %v49
    %v135 = vunpack.c.l.b16 %v50
    %v136 = vunpack.c.l.b16 %v51
    %v137 = vunpack.c.l.b16 %v52
    %v138 = vunpack.c.l.b16 %v53
    %v139 = vunpack.c.l.b16 %v54
    %v140 = vunpack.c.l.b16 %v55
    %v141 = vunpack.c.l.b16 %v56
    %v142 = vunpack.c.l.b16 %v57
    %v143 = vunpack.c.l.b16 %v58
    %v144 = vunpack.c.l.b16 %v59
    %v145 = vunpack.c.l.b16 %v60
    %v146 = vunpack.c.l.b16 %v61
    %v147 = vunpack.c.l.b16 %v62
    %v148 = vunpack.c.l.b16 %v63
    %v149 = vunpack.c.l.b16 %v64
    %v150 = vunpack.c.l.b16 %v65
    %v151 = vunpack.c.l.b16 %v66
    %v152 = vunpack.c.l.b16 %v67
    %v153 = vunpack.c.l.b16 %v68
    %v154 = vunpack.c.l.b16 %v69
    %v155 = vunpack.c.l.b16 %v70
    %v156 = vunpack.c.l.b16 %v71
    %v157 = vunpack.c.l.b16 %v72
    %v158 = vunpack.c.l.b16 %v73
    %v159 = vunpack.c.l.b16 %v74
    %v160 = vunpack.c.l.b16 %v75
    %v161 = vunpack.c.l.b16 %v76
    %v162 = vunpack.c.l.b16 %v77
    %v163 = vunpack.c.l.b16 %v78
    %v164 = vunpack.c.l.b16 %v79
    %v165 = vunpack.c.l.b16 %v80
    %v166 = vpack.c.b16 %v125, %v124
    %v167 = vpack.c.b16 %v127, %v126
    %v168 = vpack.c.b16 %v129, %v128
    %v169 = vpack.c.b16 %v131, %v130
    %v170 = vpack.c.b16 %v133, %v132
    %v171 = vpack.c.b16 %v135, %v134
    %v172 = vpack.c.b16 %v137, %v136
    %v173 = vpack.c.b16 %v139, %v138
    %v174 = vpack.c.b16 %v141, %v140
    %v175 = vpack.c.b16 %v143, %v142
    %v176 = vpack.c.b16 %v145, %v144
    %v177 = vpack.c.b16 %v147, %v146
    %v178 = vpack.c.b16 %v149, %v148
    %v179 = vpack.c.b16 %v151, %v150
    %v180 = vpack.c.b16 %v153, %v152
    %v181 = vpack.c.b16 %v155, %v154
    %v182 = vpack.c.b16 %v157, %v156
    %v183 = vpack.c.b16 %v159, %v158
    %v184 = vpack.c.b16 %v161, %v160
    %v185 = vpack.c.b16 %v163, %v162
    %v186 = vpack.c.b16 %v165, %v164
    %vm208 = vcmask 654336
    %v210 = vsel %vm208, %v38, 0
    %212 = vmatprep.subr.bf16.mxu0 0
    %213 = vmatpush1.bf16.msra.mxu0 %v173
    %214 = vmatprep.subr.bf16.mxu0 0
    %215 = vmatpush1.bf16.msra.mxu0 %v172
    %216 = vmatprep.subr.bf16.mxu0 0
    %217 = vmatpush1.bf16.msra.mxu0 %v171
    %218 = vmatprep.subr.bf16.mxu0 0
    %219 = vmatpush1.bf16.msra.mxu0 %v170
    %220 = vmatprep.subr.bf16.mxu0 0
    %221 = vmatpush1.bf16.msra.mxu0 %v169
    %222 = vmatprep.subr.bf16.mxu0 0
    %223 = vmatpush1.bf16.msra.mxu0 %v168
    %224 = vmatprep.subr.bf16.mxu0 0
    %225 = vmatpush1.bf16.msra.mxu0 %v167
    %226 = vmatprep.subr.bf16.mxu0 0
    %227 = vmatpush1.bf16.msra.mxu0 %v166
    %228 = vmatprep.subr.bf16.mxu0 0
    %229 = vmatpush2.bf16.msra.mxu0 %v181
    %230 = vmatprep.subr.bf16.mxu0 0
    %231 = vmatpush2.bf16.msra.mxu0 %v180
    %232 = vmatprep.subr.bf16.mxu0 0
    %233 = vmatpush2.bf16.msra.mxu0 %v179
    %234 = vmatprep.subr.bf16.mxu0 0
    %235 = vmatpush2.bf16.msra.mxu0 %v178
    %236 = vmatprep.subr.bf16.mxu0 0
    %237 = vmatpush2.bf16.msra.mxu0 %v177
    %238 = vmatprep.subr.bf16.mxu0 0
    %239 = vmatpush2.bf16.msra.mxu0 %v176
    %240 = vmatprep.subr.bf16.mxu0 0
    %241 = vmatpush2.bf16.msra.mxu0 %v175
    %242 = vmatprep.subr.bf16.mxu0 0
    %243 = vmatpush2.bf16.msra.mxu0 %v174
    %244 = vmatprep.mubr.bf16.mxu0 %v37
    %245 = vmatmul.mubr.bf16.gmra.mxu0 %v36
    %v246 = vpop.f32.mrf.mxu0
    %v247 = vadd.f32 %v81, %v246
    %v248 = vpop.f32.mrf.mxu0
    %v249 = vpop.f32.mrf.mxu0
    %v250 = vpop.f32.mrf.mxu0
    %251 = vdwg.mxu0
    %252 = vmatprep.subr.bf16.mxu0 0
    %253 = vmatpush1.bf16.msra.mxu0 0
    %254 = vmatprep.subr.bf16.mxu0 0
    %255 = vmatpush1.bf16.msra.mxu0 0
    %256 = vmatprep.subr.bf16.mxu0 0
    %257 = vmatpush1.bf16.msra.mxu0 0
    %258 = vmatprep.subr.bf16.mxu0 0
    %259 = vmatpush1.bf16.msra.mxu0 %v186
    %260 = vmatprep.subr.bf16.mxu0 0
    %261 = vmatpush1.bf16.msra.mxu0 %v185
    %262 = vmatprep.subr.bf16.mxu0 0
    %263 = vmatpush1.bf16.msra.mxu0 %v184
    %264 = vmatprep.subr.bf16.mxu0 0
    %265 = vmatpush1.bf16.msra.mxu0 %v183
    %266 = vmatprep.subr.bf16.mxu0 0
    %267 = vmatpush1.bf16.msra.mxu0 %v182
    %268 = vmatprep.subr.bf16.mxu0 0
    %269 = vmatpush2.bf16.msra.mxu0 0
    %270 = vmatprep.subr.bf16.mxu0 0
    %271 = vmatpush2.bf16.msra.mxu0 0
    %272 = vmatprep.subr.bf16.mxu0 0
    %273 = vmatpush2.bf16.msra.mxu0 0
    %274 = vmatprep.subr.bf16.mxu0 0
    %275 = vmatpush2.bf16.msra.mxu0 0
    %276 = vmatprep.subr.bf16.mxu0 0
    %277 = vmatpush2.bf16.msra.mxu0 0
    %278 = vmatprep.subr.bf16.mxu0 0
    %279 = vmatpush2.bf16.msra.mxu0 0
    %280 = vmatprep.subr.bf16.mxu0 0
    %281 = vmatpush2.bf16.msra.mxu0 0
    %282 = vmatprep.subr.bf16.mxu0 0
    %283 = vmatpush2.bf16.msra.mxu0 0
    %284 = vmatprep.mubr.bf16.mxu0 0
    %285 = vmatmul.mubr.bf16.gmra.mxu0 %v210
    %v286 = vpop.f32.mrf.mxu0
    %v287 = vadd.f32 %v247, %v286
    %v288 = vpop.f32.mrf.mxu0
    %v289 = vpop.f32.mrf.mxu0
    %v290 = vpop.f32.mrf.mxu0
    %291 = vdwg.mxu0
    %v292 = vmax.f32 %v287, 0.0
    %v293 = vpack.c.bf16 %v292, %v292
    %v294 = vld [vmem:[%s2] sm:$0xff]
    %v295 = vld [vmem:[%s2 + $0x8] sm:$0xf]
    %v296 = vld [vmem:[%s2 + $0xc] sm:$0xff]
    %v297 = vld [vmem:[%s2 + $0x14] sm:$0xf]
    %v298 = vld [vmem:[%s2 + $0x18] sm:$0xff]
    %v299 = vld [vmem:[%s2 + $0x20] sm:$0xf]
    %v300 = vld [vmem:[%s2 + $0x24] sm:$0xff]
    %v301 = vld [vmem:[%s2 + $0x2c] sm:$0xf]
    %v302 = vld [vmem:[%s2 + $0x30] sm:$0xff]
    %v303 = vld [vmem:[%s2 + $0x38] sm:$0xf]
    %v304 = vld [vmem:[%s2 + $0x3c] sm:$0xff]
    %v305 = vld [vmem:[%s2 + $0x44] sm:$0xf]
    %v306 = vld [vmem:[%s2 + $0x48] sm:$0xff]
    %v307 = vld [vmem:[%s2 + $0x50] sm:$0xf]
    %v308 = vld [vmem:[%s2 + $0x54] sm:$0xff]
    %v309 = vld [vmem:[%s2 + $0x5c] sm:$0xf]
    %v310 = vld [vmem:[%s2 + $0x60] sm:$0xff]
    %v311 = vld [vmem:[%s2 + $0x68] sm:$0xf]
    %v312 = vld [vmem:[%s2 + $0x6c] sm:$0xff]
    %v313 = vld [vmem:[%s2 + $0x74] sm:$0xf]
    %v314 = vld [vmem:[%s2 + $0x78] sm:$0xff]
    %v315 = vld [vmem:[%s2 + $0x80] sm:$0xf]
    %v316 = vld [vmem:[%s2 + $0x84] sm:$0xff]
    %v317 = vld [vmem:[%s2 + $0x8c] sm:$0xf]
    %v318 = vld [vmem:[%s2 + $0x90] sm:$0xff]
    %v319 = vld [vmem:[%s2 + $0x98] sm:$0xf]
    %v320 = vld [vmem:[%s2 + $0x9c] sm:$0xff]
    %v321 = vld [vmem:[%s2 + $0xa4] sm:$0xf]
    %v322 = vld [vmem:[%s2 + $0xa8] sm:$0xff]
    %v323 = vld [vmem:[%s2 + $0xb0] sm:$0xf]
    %v324 = vld [vmem:[%s2 + $0xb4] sm:$0xff]
    %v325 = vld [vmem:[%s2 + $0xbc] sm:$0xf]
    %v326 = vld [vmem:[%s3 + $0x1] sm:$0x7]
    %v359 = vunpack.c.l.b16 %v294
    %v360 = vunpack.c.h.b16 %v294
    %v361 = vunpack.c.l.b16 %v295
    %v362 = vunpack.c.l.b16 %v296
    %v363 = vunpack.c.h.b16 %v296
    %v364 = vunpack.c.l.b16 %v297
    %v365 = vunpack.c.l.b16 %v298
    %v366 = vunpack.c.h.b16 %v298
    %v367 = vunpack.c.l.b16 %v299
    %v368 = vunpack.c.l.b16 %v300
    %v369 = vunpack.c.h.b16 %v300
    %v370 = vunpack.c.l.b16 %v301
    %v371 = vunpack.c.l.b16 %v302
    %v372 = vunpack.c.h.b16 %v302
    %v373 = vunpack.c.l.b16 %v303
    %v374 = vunpack.c.l.b16 %v304
    %v375 = vunpack.c.h.b16 %v304
    %v376 = vunpack.c.l.b16 %v305
    %v377 = vunpack.c.l.b16 %v306
    %v378 = vunpack.c.h.b16 %v306
    %v379 = vunpack.c.l.b16 %v307
    %v380 = vunpack.c.l.b16 %v308
    %v381 = vunpack.c.h.b16 %v308
    %v382 = vunpack.c.l.b16 %v309
    %v383 = vunpack.c.l.b16 %v310
    %v384 = vunpack.c.h.b16 %v310
    %v385 = vunpack.c.l.b16 %v311
    %v386 = vunpack.c.l.b16 %v312
    %v387 = vunpack.c.h.b16 %v312
    %v388 = vunpack.c.l.b16 %v313
    %v389 = vunpack.c.l.b16 %v314
    %v390 = vunpack.c.h.b16 %v314
    %v391 = vunpack.c.l.b16 %v315
    %v392 = vunpack.c.l.b16 %v316
    %v393 = vunpack.c.h.b16 %v316
    %v394 = vunpack.c.l.b16 %v317
    %v395 = vunpack.c.l.b16 %v318
    %v396 = vunpack.c.h.b16 %v318
    %v397 = vunpack.c.l.b16 %v319
    %v398 = vunpack.c.l.b16 %v320
    %v399 = vunpack.c.h.b16 %v320
    %v400 = vunpack.c.l.b16 %v321
    %v401 = vunpack.c.l.b16 %v322
    %v402 = vunpack.c.h.b16 %v322
    %v403 = vunpack.c.l.b16 %v323
    %v404 = vunpack.c.l.b16 %v324
    %v405 = vunpack.c.h.b16 %v324
    %v406 = vunpack.c.l.b16 %v325
    %v407 = vpack.c.b16 %v362, %v359
    %v408 = vpack.c.b16 %v363, %v360
    %v409 = vpack.c.b16 %v364, %v361
    %v410 = vpack.c.b16 %v368, %v365
    %v411 = vpack.c.b16 %v369, %v366
    %v412 = vpack.c.b16 %v370, %v367
    %v413 = vpack.c.b16 %v374, %v371
    %v414 = vpack.c.b16 %v375, %v372
    %v415 = vpack.c.b16 %v376, %v373
    %v416 = vpack.c.b16 %v380, %v377
    %v417 = vpack.c.b16 %v381, %v378
    %v418 = vpack.c.b16 %v382, %v379
    %v419 = vpack.c.b16 %v386, %v383
    %v420 = vpack.c.b16 %v387, %v384
    %v421 = vpack.c.b16 %v388, %v385
    %v422 = vpack.c.b16 %v392, %v389
    %v423 = vpack.c.b16 %v393, %v390
    %v424 = vpack.c.b16 %v394, %v391
    %v425 = vpack.c.b16 %v398, %v395
    %v426 = vpack.c.b16 %v399, %v396
    %v427 = vpack.c.b16 %v400, %v397
    %v428 = vpack.c.b16 %v404, %v401
    %v429 = vpack.c.b16 %v405, %v402
    %v430 = vpack.c.b16 %v406, %v403
    %v456 = vlaneseq
    %v457 = vshrl.u32 %v456, 7
    %v458 = vsub.s32 0, %v457
    %v459 = vrot.slane %v326, %v458
    %v460 = vlaneseq
    %v461 = vshrl.u32 %v460, 7
    %v462 = vsub.s32 1, %v461
    %v463 = vrot.slane %v326, %v462
    %v464 = vlaneseq
    %v465 = vshrl.u32 %v464, 7
    %v466 = vsub.s32 2, %v465
    %v467 = vrot.slane %v326, %v466
    %471 = vmatprep.subr.bf16.mxu0 %v429
    %472 = vmatpush1.bf16.msra.mxu0 %v428
    %473 = vmatprep.subr.bf16.mxu0 %v426
    %474 = vmatpush1.bf16.msra.mxu0 %v425
    %475 = vmatprep.subr.bf16.mxu0 %v423
    %476 = vmatpush1.bf16.msra.mxu0 %v422
    %477 = vmatprep.subr.bf16.mxu0 %v420
    %478 = vmatpush1.bf16.msra.mxu0 %v419
    %479 = vmatprep.subr.bf16.mxu0 %v417
    %480 = vmatpush1.bf16.msra.mxu0 %v416
    %481 = vmatprep.subr.bf16.mxu0 %v414
    %482 = vmatpush1.bf16.msra.mxu0 %v413
    %483 = vmatprep.subr.bf16.mxu0 %v411
    %484 = vmatpush1.bf16.msra.mxu0 %v410
    %485 = vmatprep.subr.bf16.mxu0 %v408
    %486 = vmatpush1.bf16.msra.mxu0 %v407
    %487 = vmatprep.subr.bf16.mxu0 0
    %488 = vmatpush2.bf16.msra.mxu0 0
    %489 = vmatprep.subr.bf16.mxu0 0
    %490 = vmatpush2.bf16.msra.mxu0 0
    %491 = vmatprep.subr.bf16.mxu0 0
    %492 = vmatpush2.bf16.msra.mxu0 0
    %493 = vmatprep.subr.bf16.mxu0 0
    %494 = vmatpush2.bf16.msra.mxu0 0
    %495 = vmatprep.subr.bf16.mxu0 0
    %496 = vmatpush2.bf16.msra.mxu0 0
    %497 = vmatprep.subr.bf16.mxu0 0
    %498 = vmatpush2.bf16.msra.mxu0 0
    %499 = vmatprep.subr.bf16.mxu0 0
    %500 = vmatpush2.bf16.msra.mxu0 0
    %501 = vmatprep.subr.bf16.mxu0 0
    %502 = vmatpush2.bf16.msra.mxu0 0
    %503 = vmatprep.mubr.bf16.mxu0 0
    %504 = vmatmul.mubr.bf16.gmra.mxu0 %v293
    %v505 = vpop.f32.mrf.mxu0
    %v506 = vadd.f32 %v459, %v505
    %v507 = vpop.f32.mrf.mxu0
    %v508 = vadd.f32 %v463, %v507
    %v509 = vpop.f32.mrf.mxu0
    %v510 = vpop.f32.mrf.mxu0
    %511 = vdwg.mxu0
    %512 = vmatprep.subr.bf16.mxu0 0
    %513 = vmatpush1.bf16.msra.mxu0 %v430
    %514 = vmatprep.subr.bf16.mxu0 0
    %515 = vmatpush1.bf16.msra.mxu0 %v427
    %516 = vmatprep.subr.bf16.mxu0 0
    %517 = vmatpush1.bf16.msra.mxu0 %v424
    %518 = vmatprep.subr.bf16.mxu0 0
    %519 = vmatpush1.bf16.msra.mxu0 %v421
    %520 = vmatprep.subr.bf16.mxu0 0
    %521 = vmatpush1.bf16.msra.mxu0 %v418
    %522 = vmatprep.subr.bf16.mxu0 0
    %523 = vmatpush1.bf16.msra.mxu0 %v415
    %524 = vmatprep.subr.bf16.mxu0 0
    %525 = vmatpush1.bf16.msra.mxu0 %v412
    %526 = vmatprep.subr.bf16.mxu0 0
    %527 = vmatpush1.bf16.msra.mxu0 %v409
    %528 = vmatprep.subr.bf16.mxu0 0
    %529 = vmatpush2.bf16.msra.mxu0 0
    %530 = vmatprep.subr.bf16.mxu0 0
    %531 = vmatpush2.bf16.msra.mxu0 0
    %532 = vmatprep.subr.bf16.mxu0 0
    %533 = vmatpush2.bf16.msra.mxu0 0
    %534 = vmatprep.subr.bf16.mxu0 0
    %535 = vmatpush2.bf16.msra.mxu0 0
    %536 = vmatprep.subr.bf16.mxu0 0
    %537 = vmatpush2.bf16.msra.mxu0 0
    %538 = vmatprep.subr.bf16.mxu0 0
    %539 = vmatpush2.bf16.msra.mxu0 0
    %540 = vmatprep.subr.bf16.mxu0 0
    %541 = vmatpush2.bf16.msra.mxu0 0
    %542 = vmatprep.subr.bf16.mxu0 0
    %543 = vmatpush2.bf16.msra.mxu0 0
    %544 = vmatprep.mubr.bf16.mxu0 0
    %545 = vmatmul.mubr.bf16.gmra.mxu0 %v293
    %v546 = vpop.f32.mrf.mxu0
    %v547 = vadd.f32 %v467, %v546
    %v548 = vpop.f32.mrf.mxu0
    %v549 = vpop.f32.mrf.mxu0
    %v550 = vpop.f32.mrf.mxu0
    %551 = vdwg.mxu0
    %v555 = vcombine.low %v506, %v508
    %v557 = vunpack.c.l.s4 1966171168
    %v558 = vunpack.c.0.s8 %v557
    %v559 = vlaneseq
    %v560 = vshrl.u32 %v559, 7
    %v561 = vsub.s32 %v558, %v560
    %v562 = vrot.slane %v555, %v561
    %v564 = vunpack.c.l.s4 1966171168
    %v565 = vunpack.c.0.s8 %v564
    %v566 = vlaneseq
    %v567 = vshrl.u32 %v566, 7
    %v568 = vsub.s32 %v565, %v567
    %v569 = vrot.slane %v547, %v568
    %v570 = vcombine.low %v562, %v569
    %v572 = vunpack.c.l.s4 1966171168
    %v573 = vunpack.c.0.s8 %v572
    %v574 = vlaneseq
    %v575 = vshrl.u32 %v574, 7
    %v576 = vsub.s32 %v573, %v575
    %v577 = vrot.slane %v570, %v576
    %v579 = vlaneseq
    %vm580 = vcmp.ge.s32.totalorder %v579, 0
    %vm581 = vcmp.lt.s32.totalorder %v579, 336
    %vm582 = vmand %vm580, %vm581
    %583 = vst.msk [vmem:[#allocation2] sm:$0x7] %vm582, %v577
    // Predicated region
    $region18: #{conv1x1_relu_conv1x1.1} parent=1 // pred_check
      _
    $region19: #{conv1x1_relu_conv1x1.1} parent=1 // pred_check_branch
      %585 = sbr.rel (0) target = $region21
    $region20: #{conv1x1_relu_conv1x1.1} parent=1 // pred_region
      %s587 = ssub.s32 48, 48
      %588 = vsyncadd [#allocation3], %s587
      %s590 = sshll.u32 [#allocation2], 4
      %s591 = int_to_ptr.vmem [resolvable:$true] %s590
      %593 = dma.vmem_to_hbm [thread:$0]  %s591, 48, %s4, [#allocation3]
    $region21: #{conv1x1_relu_conv1x1.1} parent=1 // pred_fallthru
      _
    // Predicated region
    $region22: #{conv1x1_relu_conv1x1.1} parent=1 // pred_check
      _
    $region23: #{conv1x1_relu_conv1x1.1} parent=1 // pred_check_branch
      %595 = sbr.rel (0) target = $region25
    $region24: #{conv1x1_relu_conv1x1.1} parent=1 // pred_region
      %596 = dma.done [#allocation3], 48
    $region25: #{conv1x1_relu_conv1x1.1} parent=1 // pred_fallthru
      _
    %597 = vsyncpa [#allocation3], 1

</llo_original>
